<compile_context>
chip_gen: v7x
topology: tpu7x:2x2x1
jax: 0.10.0
libtpu: 0.0.40
codegen_flags: <defaults>
</compile_context>

<pallas_src>
import jax
import jax.numpy as jnp
from jax.experimental import pallas as pl
from jax.experimental.pallas import tpu as pltpu


def hypersolver_kernel(x_ref, t_ref,
                       w1_ref, b1_ref, w2_ref, b2f_ref, b2c_ref,
                       o_ref):
    x = x_ref[...]                                   # [TB, D]
    if x.dtype != jnp.float32:
        x = x.astype(jnp.float32)
    t = t_ref[...]                                   # [TB, 1]
    if t.dtype != jnp.float32:
        t = t.astype(jnp.float32)
    t2 = t * t

    # Fused first layer: one matmul -> [TB, 2H], tanh in f32 (EUP).
    h = jnp.tanh(
        jnp.dot(x, w1_ref[...], preferred_element_type=jnp.float32)
        + b1_ref[...])

    # Scale the f-half of the hidden by t and the c-half by t^2 without
    # slicing across the lane dimension (column-select on the VPU).
    two_h = h.shape[-1]
    cols = jax.lax.broadcasted_iota(jnp.int32, h.shape, 1)
    scale = jnp.where(cols < (two_h // 2), t, t2)    # [TB, 2H]
    hs = h * scale

    # Fused second layer: one matmul, K = 2H.
    y = jnp.dot(hs, w2_ref[...], preferred_element_type=jnp.float32)  # [TB, D]

    # Epilogue: Euler residual + correction, biases folded with t / t^2.
    out = x + y + t * b2f_ref[...] + t2 * b2c_ref[...]
    o_ref[...] = out.astype(o_ref.dtype)


def hypersolver_forward(x, t, params, *, tb=128):
    """Fused hypersolver forward. x: [B, D], t: [B, 1]."""
    (w1f, b1f, w2f, b2f, w1c, b1c, w2c, b2c) = params
    B, D = x.shape
    H = w1f.shape[1]

    # Fuse the two MLPs' weights once in the wrapper (folds under jit).
    w1 = jnp.concatenate([w1f, w1c], axis=1)         # [D, 2H]
    b1 = jnp.concatenate([b1f, b1c], axis=1)         # [1, 2H]
    w2 = jnp.concatenate([w2f, w2c], axis=0)         # [2H, D]

    tb = min(tb, B)
    pad = (-B) % tb
    if pad:
        x = jnp.pad(x, ((0, pad), (0, 0)))
        t = jnp.pad(t, ((0, pad), (0, 0)))
    bp = B + pad
    grid = (bp // tb,)

    const = lambda i: (0, 0)                         # weights resident in VMEM
    row = lambda i: (i, 0)                           # streamed batch tiles

    out = pl.pallas_call(
        hypersolver_kernel,
        out_shape=jax.ShapeDtypeStruct((bp, D), x.dtype),
        grid=grid,
        in_specs=[
            pl.BlockSpec((tb, D), row),              # x
            pl.BlockSpec((tb, 1), row),              # t
            pl.BlockSpec((D, 2 * H), const),         # fused W1
            pl.BlockSpec((1, 2 * H), const),         # fused b1
            pl.BlockSpec((2 * H, D), const),         # fused W2
            pl.BlockSpec((1, D), const),             # b2f
            pl.BlockSpec((1, D), const),             # b2c
        ],
        out_specs=pl.BlockSpec((tb, D), row),
        compiler_params=pltpu.CompilerParams(
            dimension_semantics=("parallel",)),
    )(x, t, w1, b1, w2, b2f, b2c)
    return out[:B]


def reference_forward(x, t, params):
    """Pure-JAX reference (mirrors the PyTorch semantics)."""
    (w1f, b1f, w2f, b2f, w1c, b1c, w2c, b2c) = params
    f = jnp.tanh(x @ w1f + b1f) @ w2f + b2f
    g = jnp.tanh(x @ w1c + b1c) @ w2c + b2c
    base_solution = x + t * f
    correction = (t * t) * g
    return base_solution + correction


def make_params(key, d, h):
    ks = jax.random.split(key, 8)
    scale_in = 1.0 / jnp.sqrt(d)
    scale_hid = 1.0 / jnp.sqrt(h)
    w1f = jax.random.normal(ks[0], (d, h), jnp.float32) * scale_in
    b1f = jax.random.normal(ks[1], (1, h), jnp.float32) * 0.1
    w2f = jax.random.normal(ks[2], (h, d), jnp.float32) * scale_hid
    b2f = jax.random.normal(ks[3], (1, d), jnp.float32) * 0.1
    w1c = jax.random.normal(ks[4], (d, h), jnp.float32) * scale_in
    b1c = jax.random.normal(ks[5], (1, h), jnp.float32) * 0.1
    w2c = jax.random.normal(ks[6], (h, d), jnp.float32) * scale_hid
    b2c = jax.random.normal(ks[7], (1, d), jnp.float32) * 0.1
    return (w1f, b1f, w2f, b2f, w1c, b1c, w2c, b2c)


if __name__ == "__main__":
    # Small but grid-exercising shapes: 2 batch tiles of 128 rows, 2H = 128.
    B, D, H = 256, 32, 64
    TB = 128

    key = jax.random.PRNGKey(0)
    k_x, k_t, k_p = jax.random.split(key, 3)
    x = jax.random.normal(k_x, (B, D), jnp.float32)
    t = jax.random.uniform(k_t, (B, 1), jnp.float32, minval=0.0, maxval=0.1)
    params = make_params(k_p, D, H)

    out = hypersolver_forward(x, t, params, tb=TB)
    out = jax.block_until_ready(out)

    ref = reference_forward(x, t, params)
    assert out.shape == (B, D) and out.dtype == jnp.float32
    assert jnp.allclose(out, ref, atol=1e-5, rtol=1e-5), "mismatch vs reference"

    print("KERNEL_OK")
</pallas_src>

<mosaic_0001>
module attributes {stable_mosaic.version = 11 : i64} {
  func.func @hypersolver_kernel(%arg0: i32, %arg1: memref<128x32xf32, #tpu.memory_space<vmem>>, %arg2: memref<128x1xf32, #tpu.memory_space<vmem>>, %arg3: memref<32x128xf32, #tpu.memory_space<vmem>>, %arg4: memref<1x128xf32, #tpu.memory_space<vmem>>, %arg5: memref<128x32xf32, #tpu.memory_space<vmem>>, %arg6: memref<1x32xf32, #tpu.memory_space<vmem>>, %arg7: memref<1x32xf32, #tpu.memory_space<vmem>>, %arg8: memref<128x32xf32, #tpu.memory_space<vmem>>) attributes {dimension_semantics = [#tpu.dimension_semantics<parallel>], iteration_bounds = array<i64: 2>, scalar_prefetch = 0 : i64, scratch_operands = 0 : i64, tpu.core_type = #tpu.core_type<tc>, window_params = [{transform_indices = @transform_0, window_bounds = array<i64: 128, 32>}, {transform_indices = @transform_1, window_bounds = array<i64: 128, 1>}, {pipeline_mode = #tpu.pipeline_mode<synchronous>, transform_indices = @transform_2, window_bounds = array<i64: 32, 128>}, {pipeline_mode = #tpu.pipeline_mode<synchronous>, transform_indices = @transform_3, window_bounds = array<i64: 1, 128>}, {pipeline_mode = #tpu.pipeline_mode<synchronous>, transform_indices = @transform_4, window_bounds = array<i64: 128, 32>}, {pipeline_mode = #tpu.pipeline_mode<synchronous>, transform_indices = @transform_5, window_bounds = array<i64: 1, 32>}, {pipeline_mode = #tpu.pipeline_mode<synchronous>, transform_indices = @transform_6, window_bounds = array<i64: 1, 32>}, {transform_indices = @transform_7, window_bounds = array<i64: 128, 32>}]} {
    %c0 = arith.constant 0 : index
    %c0_0 = arith.constant 0 : index
    %0 = vector.load %arg1[%c0, %c0_0] : memref<128x32xf32, #tpu.memory_space<vmem>>, vector<128x32xf32>
    %c0_1 = arith.constant 0 : index
    %c0_2 = arith.constant 0 : index
    %1 = vector.load %arg2[%c0_1, %c0_2] : memref<128x1xf32, #tpu.memory_space<vmem>>, vector<128x1xf32>
    %2 = arith.mulf %1, %1 : vector<128x1xf32>
    %c0_3 = arith.constant 0 : index
    %c0_4 = arith.constant 0 : index
    %3 = vector.load %arg3[%c0_3, %c0_4] : memref<32x128xf32, #tpu.memory_space<vmem>>, vector<32x128xf32>
    %cst = arith.constant dense<0.000000e+00> : vector<128x128xf32>
    %4 = tpu.matmul %0, %3, %cst {dimension_numbers = #tpu.dot_dimension_numbers<[1], [0], [0], [1], [0, 0, 1, 1], [], []>} : vector<128x32xf32>, vector<32x128xf32>, vector<128x128xf32> -> vector<128x128xf32>
    %c0_5 = arith.constant 0 : index
    %c0_6 = arith.constant 0 : index
    %5 = vector.load %arg4[%c0_5, %c0_6] : memref<1x128xf32, #tpu.memory_space<vmem>>, vector<1x128xf32>
    %6 = vector.broadcast %5 : vector<1x128xf32> to vector<128x128xf32>
    %7 = arith.addf %4, %6 : vector<128x128xf32>
    %8 = math.tanh %7 : vector<128x128xf32>
    %9 = tpu.iota {dimensions = array<i32: 1>} : vector<128x128xi32>
    %c64_i32 = arith.constant 64 : i32
    %10 = vector.broadcast %c64_i32 : i32 to vector<128x128xi32>
    %11 = arith.cmpi slt, %9, %10 : vector<128x128xi32>
    %12 = vector.shape_cast %1 : vector<128x1xf32> to vector<128x1xf32>
    %13 = vector.broadcast %12 : vector<128x1xf32> to vector<128x128xf32>
    %14 = vector.shape_cast %2 : vector<128x1xf32> to vector<128x1xf32>
    %15 = vector.broadcast %14 : vector<128x1xf32> to vector<128x128xf32>
    %16 = arith.select %11, %13, %15 : vector<128x128xi1>, vector<128x128xf32>
    %17 = arith.mulf %8, %16 : vector<128x128xf32>
    %c0_7 = arith.constant 0 : index
    %c0_8 = arith.constant 0 : index
    %18 = vector.load %arg5[%c0_7, %c0_8] : memref<128x32xf32, #tpu.memory_space<vmem>>, vector<128x32xf32>
    %cst_9 = arith.constant dense<0.000000e+00> : vector<128x32xf32>
    %19 = tpu.matmul %17, %18, %cst_9 {dimension_numbers = #tpu.dot_dimension_numbers<[1], [0], [0], [1], [0, 0, 1, 1], [], []>} : vector<128x128xf32>, vector<128x32xf32>, vector<128x32xf32> -> vector<128x32xf32>
    %20 = arith.addf %0, %19 : vector<128x32xf32>
    %c0_10 = arith.constant 0 : index
    %c0_11 = arith.constant 0 : index
    %21 = vector.load %arg6[%c0_10, %c0_11] : memref<1x32xf32, #tpu.memory_space<vmem>>, vector<1x32xf32>
    %22 = vector.broadcast %1 : vector<128x1xf32> to vector<128x32xf32>
    %23 = vector.broadcast %21 : vector<1x32xf32> to vector<128x32xf32>
    %24 = arith.mulf %22, %23 : vector<128x32xf32>
    %25 = arith.addf %20, %24 : vector<128x32xf32>
    %c0_12 = arith.constant 0 : index
    %c0_13 = arith.constant 0 : index
    %26 = vector.load %arg7[%c0_12, %c0_13] : memref<1x32xf32, #tpu.memory_space<vmem>>, vector<1x32xf32>
    %27 = vector.broadcast %2 : vector<128x1xf32> to vector<128x32xf32>
    %28 = vector.broadcast %26 : vector<1x32xf32> to vector<128x32xf32>
    %29 = arith.mulf %27, %28 : vector<128x32xf32>
    %30 = arith.addf %25, %29 : vector<128x32xf32>
    %c0_14 = arith.constant 0 : index
    %c0_15 = arith.constant 0 : index
    %31 = vector.load %arg8[%c0_14, %c0_15] : memref<128x32xf32, #tpu.memory_space<vmem>>, vector<128x32xf32>
    tpu.vector_store %arg8[%c0_14, %c0_15], %30 {strides = array<i32>} : memref<128x32xf32, #tpu.memory_space<vmem>>, vector<128x32xf32>,
    return
  }
  func.func @transform_0(%arg0: i32) -> (i32, i32) {
    %c0_i32 = arith.constant 0 : i32
    %c0_i32_0 = arith.constant 0 : i32
    return %arg0, %c0_i32 : i32, i32
  }
  func.func @transform_1(%arg0: i32) -> (i32, i32) {
    %c0_i32 = arith.constant 0 : i32
    %c0_i32_0 = arith.constant 0 : i32
    return %arg0, %c0_i32 : i32, i32
  }
  func.func @transform_2(%arg0: i32) -> (i32, i32) {
    %c0_i32 = arith.constant 0 : i32
    %c0_i32_0 = arith.constant 0 : i32
    %c0_i32_1 = arith.constant 0 : i32
    return %c0_i32, %c0_i32_0 : i32, i32
  }
  func.func @transform_3(%arg0: i32) -> (i32, i32) {
    %c0_i32 = arith.constant 0 : i32
    %c0_i32_0 = arith.constant 0 : i32
    %c0_i32_1 = arith.constant 0 : i32
    return %c0_i32, %c0_i32_0 : i32, i32
  }
  func.func @transform_4(%arg0: i32) -> (i32, i32) {
    %c0_i32 = arith.constant 0 : i32
    %c0_i32_0 = arith.constant 0 : i32
    %c0_i32_1 = arith.constant 0 : i32
    return %c0_i32, %c0_i32_0 : i32, i32
  }
  func.func @transform_5(%arg0: i32) -> (i32, i32) {
    %c0_i32 = arith.constant 0 : i32
    %c0_i32_0 = arith.constant 0 : i32
    %c0_i32_1 = arith.constant 0 : i32
    return %c0_i32, %c0_i32_0 : i32, i32
  }
  func.func @transform_6(%arg0: i32) -> (i32, i32) {
    %c0_i32 = arith.constant 0 : i32
    %c0_i32_0 = arith.constant 0 : i32
    %c0_i32_1 = arith.constant 0 : i32
    return %c0_i32, %c0_i32_0 : i32, i32
  }
  func.func @transform_7(%arg0: i32) -> (i32, i32) {
    %c0_i32 = arith.constant 0 : i32
    %c0_i32_0 = arith.constant 0 : i32
    return %arg0, %c0_i32 : i32, i32
  }
}

</mosaic_0001>

<llo_original>
// kernel: tpu_custom_call.1
$region0: #{tpu_custom_call.1}
  #allocation0 [shape = 'u32[]', space=smem, size = 0x4, offset = 0x4, fixed_abs, tag = 'smem constant byte address 0x4 - core index']
  #allocation1 [shape = 'u32[144,128]{1,0:T(1,128)}', space=vmem, size = 0x12000, scoped, tag = 'internal scratch']
  %s0 = inlined_call_operand.vmem [shape: f32[256,32], index: 0, kind: input, shape index: {}]
  %s1 = inlined_call_operand.vmem [shape: f32[256,1], index: 1, kind: input, shape index: {}]
  %s2 = inlined_call_operand.vmem [shape: f32[32,128], index: 2, kind: input, shape index: {}]
  %s3 = inlined_call_operand.vmem [shape: f32[1,128], index: 3, kind: input, shape index: {}]
  %s4 = inlined_call_operand.vmem [shape: f32[128,32], index: 4, kind: input, shape index: {}]
  %s5 = inlined_call_operand.vmem [shape: f32[1,32], index: 5, kind: input, shape index: {}]
  %s6 = inlined_call_operand.vmem [shape: f32[1,32], index: 6, kind: input, shape index: {}]
  %s7 = inlined_call_operand.vmem [shape: f32[256,32], index: 7, kind: output, shape index: {}]
  %s8 = sld [smem:[#allocation0]]
  $region61: #{tpu_custom_call.1} parent=0
    _
  %s10 = ssub.s32 1, %s8
  %s11 = scalar_select 0, %s10, %s8
  loop: start=0, step=1, limit=4
  $region2: #{tpu_custom_call.1} parent=0 // loop_pre_header
    _
  $region3: #{tpu_custom_call.1} parent=0 // loop_header
    %s13 = sphi 0, %s17
    %p14 = scmp.ge.s32.totalorder %s13, 4
    %s23 = sphi 0, %s25
    %s26 = sphi 0, %s23
    %s27 = sphi 0, %s26
    %s43 = sphi 0, %s27
    %s49 = sphi 0, %s51
    %s52 = sphi 0, %s49
    %s53 = sphi 0, %s52
    %s69 = sphi 0, %s53
    %s73 = sphi 0, %s73
    %s75 = sphi 0, %s73
    %s76 = sphi 0, %s75
    %s90 = sphi 0, %s76
    %s94 = sphi 0, %s94
    %s96 = sphi 0, %s94
    %s97 = sphi 0, %s96
    %s111 = sphi 0, %s97
    %s115 = sphi 0, %s115
    %s117 = sphi 0, %s115
    %s118 = sphi 0, %s117
    %s132 = sphi 0, %s118
    %s136 = sphi 0, %s136
    %s138 = sphi 0, %s136
    %s139 = sphi 0, %s138
    %s153 = sphi 0, %s139
    %s157 = sphi 0, %s157
    %s159 = sphi 0, %s157
    %s160 = sphi 0, %s159
    %s174 = sphi 0, %s160
    %s180 = sphi 0, %s182
    %s183 = sphi 0, %s180
    %s184 = sphi 0, %s183
    %s200 = sphi 0, %s184
  $region4: #{tpu_custom_call.1} parent=0 // loop_header_branch
    %16 = sbr.rel (%p14) target = $region8
  $region5: #{tpu_custom_call.1} parent=0 // loop_body
    %s18 = ssub.s32 %s13, 1
    %s19 = ssub.s32 %s13, 2
    %s20 = sadd.s32 %s13, 1
    %s21 = ssub.s32 %s13, %s20
    %p22 = scmp.eq.s32.totalorder %s21, 0
    %s24 = sadd.s32 %s23, 1
    %s25 = scalar_select %p22, %s23, %s24
    %p28 = pneg %p22
    %p29 = scmp.eq.s32.totalorder %s13, 1
    %p30 = por %p28, %p29
    %p31 = scmp.ne.s32.totalorder %s23, %s26
    %p32 = scmp.eq.s32.totalorder %s13, 0
    %p33 = por %p31, %p32
    %p34 = scmp.ne.s32.totalorder %s23, %s26
    %p35 = scmp.eq.s32.totalorder %s18, 1
    %p36 = por %p34, %p35
    %p37 = scmp.ne.s32.totalorder %s26, %s27
    %p38 = scmp.eq.s32.totalorder %s18, 0
    %p39 = por %p37, %p38
    %p40 = scmp.ne.s32.totalorder %s26, %s27
    %p41 = scmp.eq.s32.totalorder %s19, 1
    %p42 = por %p40, %p41
    %p44 = scmp.ne.s32.totalorder %s27, %s43
    %p45 = scmp.eq.s32.totalorder %s19, 0
    %p46 = por %p44, %p45
    %s47 = ssub.s32 %s13, %s20
    %p48 = scmp.eq.s32.totalorder %s47, 0
    %s50 = sadd.s32 %s49, 1
    %s51 = scalar_select %p48, %s49, %s50
    %p54 = pneg %p48
    %p55 = scmp.eq.s32.totalorder %s13, 1
    %p56 = por %p54, %p55
    %p57 = scmp.ne.s32.totalorder %s49, %s52
    %p58 = scmp.eq.s32.totalorder %s13, 0
    %p59 = por %p57, %p58
    %p60 = scmp.ne.s32.totalorder %s49, %s52
    %p61 = scmp.eq.s32.totalorder %s18, 1
    %p62 = por %p60, %p61
    %p63 = scmp.ne.s32.totalorder %s52, %s53
    %p64 = scmp.eq.s32.totalorder %s18, 0
    %p65 = por %p63, %p64
    %p66 = scmp.ne.s32.totalorder %s52, %s53
    %p67 = scmp.eq.s32.totalorder %s19, 1
    %p68 = por %p66, %p67
    %p70 = scmp.ne.s32.totalorder %s53, %s69
    %p71 = scmp.eq.s32.totalorder %s19, 0
    %p72 = por %p70, %p71
    %s74 = sadd.s32 %s73, 1
    %p77 = scmp.eq.s32.totalorder %s13, 1
    %p78 = scmp.ne.s32.totalorder %s73, %s75
    %p79 = scmp.eq.s32.totalorder %s13, 0
    %p80 = por %p78, %p79
    %p81 = scmp.ne.s32.totalorder %s73, %s75
    %p82 = scmp.eq.s32.totalorder %s18, 1
    %p83 = por %p81, %p82
    %p84 = scmp.ne.s32.totalorder %s75, %s76
    %p85 = scmp.eq.s32.totalorder %s18, 0
    %p86 = por %p84, %p85
    %p87 = scmp.ne.s32.totalorder %s75, %s76
    %p88 = scmp.eq.s32.totalorder %s19, 1
    %p89 = por %p87, %p88
    %p91 = scmp.ne.s32.totalorder %s76, %s90
    %p92 = scmp.eq.s32.totalorder %s19, 0
    %p93 = por %p91, %p92
    %s95 = sadd.s32 %s94, 1
    %p98 = scmp.eq.s32.totalorder %s13, 1
    %p99 = scmp.ne.s32.totalorder %s94, %s96
    %p100 = scmp.eq.s32.totalorder %s13, 0
    %p101 = por %p99, %p100
    %p102 = scmp.ne.s32.totalorder %s94, %s96
    %p103 = scmp.eq.s32.totalorder %s18, 1
    %p104 = por %p102, %p103
    %p105 = scmp.ne.s32.totalorder %s96, %s97
    %p106 = scmp.eq.s32.totalorder %s18, 0
    %p107 = por %p105, %p106
    %p108 = scmp.ne.s32.totalorder %s96, %s97
    %p109 = scmp.eq.s32.totalorder %s19, 1
    %p110 = por %p108, %p109
    %p112 = scmp.ne.s32.totalorder %s97, %s111
    %p113 = scmp.eq.s32.totalorder %s19, 0
    %p114 = por %p112, %p113
    %s116 = sadd.s32 %s115, 1
    %p119 = scmp.eq.s32.totalorder %s13, 1
    %p120 = scmp.ne.s32.totalorder %s115, %s117
    %p121 = scmp.eq.s32.totalorder %s13, 0
    %p122 = por %p120, %p121
    %p123 = scmp.ne.s32.totalorder %s115, %s117
    %p124 = scmp.eq.s32.totalorder %s18, 1
    %p125 = por %p123, %p124
    %p126 = scmp.ne.s32.totalorder %s117, %s118
    %p127 = scmp.eq.s32.totalorder %s18, 0
    %p128 = por %p126, %p127
    %p129 = scmp.ne.s32.totalorder %s117, %s118
    %p130 = scmp.eq.s32.totalorder %s19, 1
    %p131 = por %p129, %p130
    %p133 = scmp.ne.s32.totalorder %s118, %s132
    %p134 = scmp.eq.s32.totalorder %s19, 0
    %p135 = por %p133, %p134
    %s137 = sadd.s32 %s136, 1
    %p140 = scmp.eq.s32.totalorder %s13, 1
    %p141 = scmp.ne.s32.totalorder %s136, %s138
    %p142 = scmp.eq.s32.totalorder %s13, 0
    %p143 = por %p141, %p142
    %p144 = scmp.ne.s32.totalorder %s136, %s138
    %p145 = scmp.eq.s32.totalorder %s18, 1
    %p146 = por %p144, %p145
    %p147 = scmp.ne.s32.totalorder %s138, %s139
    %p148 = scmp.eq.s32.totalorder %s18, 0
    %p149 = por %p147, %p148
    %p150 = scmp.ne.s32.totalorder %s138, %s139
    %p151 = scmp.eq.s32.totalorder %s19, 1
    %p152 = por %p150, %p151
    %p154 = scmp.ne.s32.totalorder %s139, %s153
    %p155 = scmp.eq.s32.totalorder %s19, 0
    %p156 = por %p154, %p155
    %s158 = sadd.s32 %s157, 1
    %p161 = scmp.eq.s32.totalorder %s13, 1
    %p162 = scmp.ne.s32.totalorder %s157, %s159
    %p163 = scmp.eq.s32.totalorder %s13, 0
    %p164 = por %p162, %p163
    %p165 = scmp.ne.s32.totalorder %s157, %s159
    %p166 = scmp.eq.s32.totalorder %s18, 1
    %p167 = por %p165, %p166
    %p168 = scmp.ne.s32.totalorder %s159, %s160
    %p169 = scmp.eq.s32.totalorder %s18, 0
    %p170 = por %p168, %p169
    %p171 = scmp.ne.s32.totalorder %s159, %s160
    %p172 = scmp.eq.s32.totalorder %s19, 1
    %p173 = por %p171, %p172
    %p175 = scmp.ne.s32.totalorder %s160, %s174
    %p176 = scmp.eq.s32.totalorder %s19, 0
    %p177 = por %p175, %p176
    %s178 = ssub.s32 %s13, %s20
    %p179 = scmp.eq.s32.totalorder %s178, 0
    %s181 = sadd.s32 %s180, 1
    %s182 = scalar_select %p179, %s180, %s181
    %p185 = pneg %p179
    %p186 = scmp.eq.s32.totalorder %s13, 1
    %p187 = por %p185, %p186
    %p188 = scmp.ne.s32.totalorder %s180, %s183
    %p189 = scmp.eq.s32.totalorder %s13, 0
    %p190 = por %p188, %p189
    %p191 = scmp.ne.s32.totalorder %s180, %s183
    %p192 = scmp.eq.s32.totalorder %s18, 1
    %p193 = por %p191, %p192
    %p194 = scmp.ne.s32.totalorder %s183, %s184
    %p195 = scmp.eq.s32.totalorder %s18, 0
    %p196 = por %p194, %p195
    %p197 = scmp.ne.s32.totalorder %s183, %s184
    %p198 = scmp.eq.s32.totalorder %s19, 1
    %p199 = por %p197, %p198
    %p201 = scmp.ne.s32.totalorder %s184, %s200
    %p202 = scmp.eq.s32.totalorder %s19, 0
    %p203 = por %p201, %p202
    %p204 = scmp.le.s32.totalorder 1, %s13
    %p205 = scmp.lt.s32.totalorder %s13, 3
    %p206 = pnand %p204, %p205
    %p207 = pneg %p206
    // Predicated region
    $region9: #{tpu_custom_call.1} parent=5 // pred_check
      _
    $region10: #{tpu_custom_call.1} parent=5 // pred_check_branch
      %209 = sbr.rel (%p206) target = $region12
    $region11: #{tpu_custom_call.1} parent=5 // pred_region
      %s210 = ssub.s32 %s13, 1
      // Predicated region
      $region13: #{tpu_custom_call.1} parent=11 // pred_check
        %p211 = pneg %p86
      $region14: #{tpu_custom_call.1} parent=11 // pred_check_branch
        %213 = sbr.rel (%p211) target = $region16
      $region15: #{tpu_custom_call.1} parent=11 // pred_region
        _
      $region16: #{tpu_custom_call.1} parent=11 // pred_fallthru
        _
      // Predicated region
      $region17: #{tpu_custom_call.1} parent=11 // pred_check
        %p214 = pneg %p107
      $region18: #{tpu_custom_call.1} parent=11 // pred_check_branch
        %216 = sbr.rel (%p214) target = $region20
      $region19: #{tpu_custom_call.1} parent=11 // pred_region
        _
      $region20: #{tpu_custom_call.1} parent=11 // pred_fallthru
        _
      // Predicated region
      $region21: #{tpu_custom_call.1} parent=11 // pred_check
        %p217 = pneg %p128
      $region22: #{tpu_custom_call.1} parent=11 // pred_check_branch
        %219 = sbr.rel (%p217) target = $region24
      $region23: #{tpu_custom_call.1} parent=11 // pred_region
        _
      $region24: #{tpu_custom_call.1} parent=11 // pred_fallthru
        _
      // Predicated region
      $region25: #{tpu_custom_call.1} parent=11 // pred_check
        %p220 = pneg %p149
      $region26: #{tpu_custom_call.1} parent=11 // pred_check_branch
        %222 = sbr.rel (%p220) target = $region28
      $region27: #{tpu_custom_call.1} parent=11 // pred_region
        _
      $region28: #{tpu_custom_call.1} parent=11 // pred_fallthru
        _
      // Predicated region
      $region29: #{tpu_custom_call.1} parent=11 // pred_check
        %p223 = pneg %p170
      $region30: #{tpu_custom_call.1} parent=11 // pred_check_branch
        %225 = sbr.rel (%p223) target = $region32
      $region31: #{tpu_custom_call.1} parent=11 // pred_region
        _
      $region32: #{tpu_custom_call.1} parent=11 // pred_fallthru
        _
    $region12: #{tpu_custom_call.1} parent=5 // pred_fallthru
      _
    %p226 = scmp.lt.s32.totalorder %s13, 2
    // Predicated region
    $region33: #{tpu_custom_call.1} parent=5 // pred_check
      %p227 = pneg %p226
    $region34: #{tpu_custom_call.1} parent=5 // pred_check_branch
      %229 = sbr.rel (%p227) target = $region36
    $region35: #{tpu_custom_call.1} parent=5 // pred_region
      // Predicated region
      $region37: #{tpu_custom_call.1} parent=35 // pred_check
        %p230 = pneg %p33
      $region38: #{tpu_custom_call.1} parent=35 // pred_check_branch
        %232 = sbr.rel (%p230) target = $region40
      $region39: #{tpu_custom_call.1} parent=35 // pred_region
        %s233 = smul.u32 16, %s13
        %p234 = scmp.lt.s32.totalorder %s233, 31
        %s235 = scalar_select %p234, %s233, 31
        %s236 = smul.addr %s235, 8
        %s237 = scalar_lea.vmem %s0, %s236
        %s238 = smul.u32 16, %s13
      $region40: #{tpu_custom_call.1} parent=35 // pred_fallthru
        _
      // Predicated region
      $region41: #{tpu_custom_call.1} parent=35 // pred_check
        %p239 = pneg %p59
      $region42: #{tpu_custom_call.1} parent=35 // pred_check_branch
        %241 = sbr.rel (%p239) target = $region44
      $region43: #{tpu_custom_call.1} parent=35 // pred_region
        %s242 = smul.u32 16, %s13
        %p243 = scmp.lt.s32.totalorder %s242, 31
        %s244 = scalar_select %p243, %s242, 31
        %s245 = smul.addr %s244, 8
        %s246 = scalar_lea.vmem %s1, %s245
        %s247 = smul.u32 16, %s13
      $region44: #{tpu_custom_call.1} parent=35 // pred_fallthru
        _
    $region36: #{tpu_custom_call.1} parent=5 // pred_fallthru
      _
    %p248 = scmp.le.s32.totalorder 1, %s13
    %p249 = scmp.lt.s32.totalorder %s13, 3
    %p250 = pnand %p248, %p249
    %p251 = pneg %p250
    // Predicated region
    $region45: #{tpu_custom_call.1} parent=5 // pred_check
      _
    $region46: #{tpu_custom_call.1} parent=5 // pred_check_branch
      %253 = sbr.rel (%p250) target = $region48
    $region47: #{tpu_custom_call.1} parent=5 // pred_region
      %s254 = ssub.s32 %s13, 1
      %s255 = smul.u32 16, %s18
      %p256 = scmp.lt.s32.totalorder %s255, 31
      %s257 = scalar_select %p256, %s255, 31
      %s258 = smul.addr %s257, 8
      %s259 = scalar_lea.vmem %s0, %s258
      %p260 = pneg %p39
      %p261 = pneg %p36
      %s262 = smul.u32 16, %s18
      %p263 = scmp.lt.s32.totalorder %s262, 31
      %s264 = scalar_select %p263, %s262, 31
      %s265 = smul.addr %s264, 8
      %s266 = scalar_lea.vmem %s1, %s265
      %p267 = pneg %p65
      %p268 = pneg %p62
      %p269 = pneg %p86
      %p270 = pneg %p83
      %p271 = pneg %p107
      %p272 = pneg %p104
      %p273 = pneg %p128
      %p274 = pneg %p125
      %p275 = pneg %p149
      %p276 = pneg %p146
      %p277 = pneg %p170
      %p278 = pneg %p167
      %p279 = pneg %p196
      %p280 = pneg %p193
      %s281 = smul.u32 16, %s18
      %p282 = scmp.lt.s32.totalorder %s281, 31
      %s283 = scalar_select %p282, %s281, 31
      %s284 = smul.addr %s283, 8
      %s285 = scalar_lea.vmem %s7, %s284
      %s286 = smul.u32 16, %s18
      %p287 = scmp.lt.s32.totalorder %s286, 31
      %s288 = scalar_select %p287, %s286, 31
      %s289 = smul.addr %s288, 8
      %s290 = scalar_lea.vmem %s0, %s289
      %s291 = smul.u32 16, %s18
      %s292 = smul.u32 16, %s18
      %p293 = scmp.lt.s32.totalorder %s292, 31
      %s294 = scalar_select %p293, %s292, 31
      %s295 = smul.addr %s294, 8
      %s296 = scalar_lea.vmem %s1, %s295
      %s297 = smul.u32 16, %s18
      %s298 = smul.u32 16, %s18
      %p299 = scmp.lt.s32.totalorder %s298, 31
      %s300 = scalar_select %p299, %s298, 31
      %s301 = smul.addr %s300, 8
      %s302 = scalar_lea.vmem %s7, %s301
      %s303 = smul.u32 16, %s18
      %v304 = vld [vmem:[%s290] sm:$0xff]
      %v305 = vld [vmem:[%s290 + $0x8] sm:$0xff]
      %v306 = vld [vmem:[%s290 + $0x10] sm:$0xff]
      %v307 = vld [vmem:[%s290 + $0x18] sm:$0xff]
      %v308 = vld [vmem:[%s290 + $0x20] sm:$0xff]
      %v309 = vld [vmem:[%s290 + $0x28] sm:$0xff]
      %v310 = vld [vmem:[%s290 + $0x30] sm:$0xff]
      %v311 = vld [vmem:[%s290 + $0x38] sm:$0xff]
      %v312 = vld [vmem:[%s290 + $0x40] sm:$0xff]
      %v313 = vld [vmem:[%s290 + $0x48] sm:$0xff]
      %v314 = vld [vmem:[%s290 + $0x50] sm:$0xff]
      %v315 = vld [vmem:[%s290 + $0x58] sm:$0xff]
      %v316 = vld [vmem:[%s290 + $0x60] sm:$0xff]
      %v317 = vld [vmem:[%s290 + $0x68] sm:$0xff]
      %v318 = vld [vmem:[%s290 + $0x70] sm:$0xff]
      %v319 = vld [vmem:[%s290 + $0x78] sm:$0xff]
      %v320 = vld [vmem:[%s296] sm:$0xff]
      %v321 = vld [vmem:[%s296 + $0x8] sm:$0xff]
      %v322 = vld [vmem:[%s296 + $0x10] sm:$0xff]
      %v323 = vld [vmem:[%s296 + $0x18] sm:$0xff]
      %v324 = vld [vmem:[%s296 + $0x20] sm:$0xff]
      %v325 = vld [vmem:[%s296 + $0x28] sm:$0xff]
      %v326 = vld [vmem:[%s296 + $0x30] sm:$0xff]
      %v327 = vld [vmem:[%s296 + $0x38] sm:$0xff]
      %v328 = vld [vmem:[%s296 + $0x40] sm:$0xff]
      %v329 = vld [vmem:[%s296 + $0x48] sm:$0xff]
      %v330 = vld [vmem:[%s296 + $0x50] sm:$0xff]
      %v331 = vld [vmem:[%s296 + $0x58] sm:$0xff]
      %v332 = vld [vmem:[%s296 + $0x60] sm:$0xff]
      %v333 = vld [vmem:[%s296 + $0x68] sm:$0xff]
      %v334 = vld [vmem:[%s296 + $0x70] sm:$0xff]
      %v335 = vld [vmem:[%s296 + $0x78] sm:$0xff]
      %v336 = vmul.f32 %v320, %v320
      %v337 = vmul.f32 %v321, %v321
      %v338 = vmul.f32 %v322, %v322
      %v339 = vmul.f32 %v323, %v323
      %v340 = vmul.f32 %v324, %v324
      %v341 = vmul.f32 %v325, %v325
      %v342 = vmul.f32 %v326, %v326
      %v343 = vmul.f32 %v327, %v327
      %v344 = vmul.f32 %v328, %v328
      %v345 = vmul.f32 %v329, %v329
      %v346 = vmul.f32 %v330, %v330
      %v347 = vmul.f32 %v331, %v331
      %v348 = vmul.f32 %v332, %v332
      %v349 = vmul.f32 %v333, %v333
      %v350 = vmul.f32 %v334, %v334
      %v351 = vmul.f32 %v335, %v335
      %v352 = vld [vmem:[%s2] sm:$0xff]
      %v353 = vld [vmem:[%s2 + $0x8] sm:$0xff]
      %v354 = vld [vmem:[%s2 + $0x10] sm:$0xff]
      %v355 = vld [vmem:[%s2 + $0x18] sm:$0xff]
      %v356 = vld [vmem:[%s3] sm:$0x1]
      %v358 = vlaneseq
      %v359 = vshrl.u32 %v358, 7
      %v360 = vsub.s32 0, %v359
      %v361 = vrot.slane %v356, %v360
      %vm363 = vcmask 261120
      %v365 = vsel %vm363, %v304, 0
      %v368 = vsel %vm363, %v305, 0
      %v371 = vsel %vm363, %v306, 0
      %v374 = vsel %vm363, %v307, 0
      %v377 = vsel %vm363, %v308, 0
      %v380 = vsel %vm363, %v309, 0
      %v383 = vsel %vm363, %v310, 0
      %v386 = vsel %vm363, %v311, 0
      %v389 = vsel %vm363, %v312, 0
      %v392 = vsel %vm363, %v313, 0
      %v395 = vsel %vm363, %v314, 0
      %v398 = vsel %vm363, %v315, 0
      %v401 = vsel %vm363, %v316, 0
      %v404 = vsel %vm363, %v317, 0
      %v407 = vsel %vm363, %v318, 0
      %v410 = vsel %vm363, %v319, 0
      %412 = vmatprep.subr.mxu0 0.0
      %413 = vmatpush1.msra.mxu0 %v352
      %414 = vmatprep.subr.mxu0 0.0
      %415 = vmatpush1.msra.mxu0 %v353
      %416 = vmatprep.subr.mxu0 0.0
      %417 = vmatpush1.msra.mxu0 %v354
      %418 = vmatprep.subr.mxu0 0.0
      %419 = vmatpush1.msra.mxu0 %v355
      %420 = vmatprep.subr.mxu0 0.0
      %421 = vmatpush1.msra.mxu0 0.0
      %422 = vmatprep.subr.mxu0 0.0
      %423 = vmatpush1.msra.mxu0 0.0
      %424 = vmatprep.subr.mxu0 0.0
      %425 = vmatpush1.msra.mxu0 0.0
      %426 = vmatprep.subr.mxu0 0.0
      %427 = vmatpush1.msra.mxu0 0.0
      %428 = vmatprep.subr.mxu0 0.0
      %429 = vmatpush1.msra.mxu0 0.0
      %430 = vmatprep.subr.mxu0 0.0
      %431 = vmatpush1.msra.mxu0 0.0
      %432 = vmatprep.subr.mxu0 0.0
      %433 = vmatpush1.msra.mxu0 0.0
      %434 = vmatprep.subr.mxu0 0.0
      %435 = vmatpush1.msra.mxu0 0.0
      %436 = vmatprep.subr.mxu0 0.0
      %437 = vmatpush1.msra.mxu0 0.0
      %438 = vmatprep.subr.mxu0 0.0
      %439 = vmatpush1.msra.mxu0 0.0
      %440 = vmatprep.subr.mxu0 0.0
      %441 = vmatpush1.msra.mxu0 0.0
      %442 = vmatprep.subr.mxu0 0.0
      %443 = vmatpush1.msra.mxu0 0.0
      %444 = vmatprep.subr.mxu0 0.0
      %445 = vmatpush1.msra.mxu0 0.0
      %446 = vmatprep.subr.mxu0 0.0
      %447 = vmatpush1.msra.mxu0 0.0
      %448 = vmatprep.subr.mxu0 0.0
      %449 = vmatpush1.msra.mxu0 0.0
      %450 = vmatprep.subr.mxu0 0.0
      %451 = vmatpush1.msra.mxu0 0.0
      %452 = vmatprep.subr.mxu0 0.0
      %453 = vmatpush1.msra.mxu0 0.0
      %454 = vmatprep.subr.mxu0 0.0
      %455 = vmatpush1.msra.mxu0 0.0
      %456 = vmatprep.subr.mxu0 0.0
      %457 = vmatpush1.msra.mxu0 0.0
      %458 = vmatprep.subr.mxu0 0.0
      %459 = vmatpush1.msra.mxu0 0.0
      %460 = vmatprep.subr.mxu0 0.0
      %461 = vmatpush1.msra.mxu0 0.0
      %462 = vmatprep.subr.mxu0 0.0
      %463 = vmatpush1.msra.mxu0 0.0
      %464 = vmatprep.subr.mxu0 0.0
      %465 = vmatpush1.msra.mxu0 0.0
      %466 = vmatprep.subr.mxu0 0.0
      %467 = vmatpush1.msra.mxu0 0.0
      %468 = vmatprep.subr.mxu0 0.0
      %469 = vmatpush1.msra.mxu0 0.0
      %470 = vmatprep.subr.mxu0 0.0
      %471 = vmatpush1.msra.mxu0 0.0
      %472 = vmatprep.subr.mxu0 0.0
      %473 = vmatpush1.msra.mxu0 0.0
      %474 = vmatprep.subr.mxu0 0.0
      %475 = vmatpush1.msra.mxu0 0.0
      %476 = vmatprep.mubr.f32.mxu0 0.0
      %477 = vmatmul.mubr.f32.gmra.mrb[0].mxu0 %v365
      %v478 = vpop.f32.mrb[0].mxu0
      %v479 = vadd.f32 %v361, %v478
      %v480 = vpop.f32.mrb[0].mxu0
      %481 = vmatprep.mubr.f32.mxu0 0.0
      %482 = vmatmul.mubr.f32.gmra.mrb[0].mxu0 %v368
      %v483 = vpop.f32.mrb[0].mxu0
      %v484 = vadd.f32 %v361, %v483
      %v485 = vpop.f32.mrb[0].mxu0
      %486 = vmatprep.mubr.f32.mxu0 0.0
      %487 = vmatmul.mubr.f32.gmra.mrb[0].mxu0 %v371
      %v488 = vpop.f32.mrb[0].mxu0
      %v489 = vadd.f32 %v361, %v488
      %v490 = vpop.f32.mrb[0].mxu0
      %491 = vmatprep.mubr.f32.mxu0 0.0
      %492 = vmatmul.mubr.f32.gmra.mrb[0].mxu0 %v374
      %v493 = vpop.f32.mrb[0].mxu0
      %v494 = vadd.f32 %v361, %v493
      %v495 = vpop.f32.mrb[0].mxu0
      %496 = vmatprep.mubr.f32.mxu0 0.0
      %497 = vmatmul.mubr.f32.gmra.mrb[0].mxu0 %v377
      %v498 = vpop.f32.mrb[0].mxu0
      %v499 = vadd.f32 %v361, %v498
      %v500 = vpop.f32.mrb[0].mxu0
      %501 = vmatprep.mubr.f32.mxu0 0.0
      %502 = vmatmul.mubr.f32.gmra.mrb[0].mxu0 %v380
      %v503 = vpop.f32.mrb[0].mxu0
      %v504 = vadd.f32 %v361, %v503
      %v505 = vpop.f32.mrb[0].mxu0
      %506 = vmatprep.mubr.f32.mxu0 0.0
      %507 = vmatmul.mubr.f32.gmra.mrb[0].mxu0 %v383
      %v508 = vpop.f32.mrb[0].mxu0
      %v509 = vadd.f32 %v361, %v508
      %v510 = vpop.f32.mrb[0].mxu0
      %511 = vmatprep.mubr.f32.mxu0 0.0
      %512 = vmatmul.mubr.f32.gmra.mrb[0].mxu0 %v386
      %v513 = vpop.f32.mrb[0].mxu0
      %v514 = vadd.f32 %v361, %v513
      %v515 = vpop.f32.mrb[0].mxu0
      %516 = vmatprep.mubr.f32.mxu0 0.0
      %517 = vmatmul.mubr.f32.gmra.mrb[0].mxu0 %v389
      %v518 = vpop.f32.mrb[0].mxu0
      %v519 = vadd.f32 %v361, %v518
      %v520 = vpop.f32.mrb[0].mxu0
      %521 = vmatprep.mubr.f32.mxu0 0.0
      %522 = vmatmul.mubr.f32.gmra.mrb[0].mxu0 %v392
      %v523 = vpop.f32.mrb[0].mxu0
      %v524 = vadd.f32 %v361, %v523
      %v525 = vpop.f32.mrb[0].mxu0
      %526 = vmatprep.mubr.f32.mxu0 0.0
      %527 = vmatmul.mubr.f32.gmra.mrb[0].mxu0 %v395
      %v528 = vpop.f32.mrb[0].mxu0
      %v529 = vadd.f32 %v361, %v528
      %v530 = vpop.f32.mrb[0].mxu0
      %531 = vmatprep.mubr.f32.mxu0 0.0
      %532 = vmatmul.mubr.f32.gmra.mrb[0].mxu0 %v398
      %v533 = vpop.f32.mrb[0].mxu0
      %v534 = vadd.f32 %v361, %v533
      %v535 = vpop.f32.mrb[0].mxu0
      %536 = vmatprep.mubr.f32.mxu0 0.0
      %537 = vmatmul.mubr.f32.gmra.mrb[0].mxu0 %v401
      %v538 = vpop.f32.mrb[0].mxu0
      %v539 = vadd.f32 %v361, %v538
      %v540 = vpop.f32.mrb[0].mxu0
      %541 = vmatprep.mubr.f32.mxu0 0.0
      %542 = vmatmul.mubr.f32.gmra.mrb[0].mxu0 %v404
      %v543 = vpop.f32.mrb[0].mxu0
      %v544 = vadd.f32 %v361, %v543
      %v545 = vpop.f32.mrb[0].mxu0
      %546 = vmatprep.mubr.f32.mxu0 0.0
      %547 = vmatmul.mubr.f32.gmra.mrb[0].mxu0 %v407
      %v548 = vpop.f32.mrb[0].mxu0
      %v549 = vadd.f32 %v361, %v548
      %v550 = vpop.f32.mrb[0].mxu0
      %551 = vmatprep.mubr.f32.mxu0 0.0
      %552 = vmatmul.mubr.f32.gmra.mrb[0].mxu0 %v410
      %v553 = vpop.f32.mrb[0].mxu0
      %v554 = vadd.f32 %v361, %v553
      %v555 = vpop.f32.mrb[0].mxu0
      %556 = vdwg.mxu0
      %v557 = vtanh.pop %v479
      %v558 = vtanh.pop %v484
      %v559 = vtanh.pop %v489
      %v560 = vtanh.pop %v494
      %v561 = vtanh.pop %v499
      %v562 = vtanh.pop %v504
      %v563 = vtanh.pop %v509
      %v564 = vtanh.pop %v514
      %v565 = vtanh.pop %v519
      %v566 = vtanh.pop %v524
      %v567 = vtanh.pop %v529
      %v568 = vtanh.pop %v534
      %v569 = vtanh.pop %v539
      %v570 = vtanh.pop %v544
      %v571 = vtanh.pop %v549
      %v572 = vtanh.pop %v554
      %v573 = vlaneseq
      %v574 = vand.u32 %v573, 127
      %vm575 = vcmp.lt.s32.totalorder %v574, 64
      %577 = vset.pattern.permute.xlu0 0
      %578 = vperm.xlu0 %577, %v320
      %v579 = vpop.permute.xlu0 %578
      %582 = vset.pattern.permute.xlu0 0
      %583 = vperm.xlu0 %582, %v321
      %v584 = vpop.permute.xlu0 %583
      %587 = vset.pattern.permute.xlu0 0
      %588 = vperm.xlu0 %587, %v322
      %v589 = vpop.permute.xlu0 %588
      %592 = vset.pattern.permute.xlu0 0
      %593 = vperm.xlu0 %592, %v323
      %v594 = vpop.permute.xlu0 %593
      %597 = vset.pattern.permute.xlu0 0
      %598 = vperm.xlu0 %597, %v324
      %v599 = vpop.permute.xlu0 %598
      %602 = vset.pattern.permute.xlu0 0
      %603 = vperm.xlu0 %602, %v325
      %v604 = vpop.permute.xlu0 %603
      %607 = vset.pattern.permute.xlu0 0
      %608 = vperm.xlu0 %607, %v326
      %v609 = vpop.permute.xlu0 %608
      %612 = vset.pattern.permute.xlu0 0
      %613 = vperm.xlu0 %612, %v327
      %v614 = vpop.permute.xlu0 %613
      %617 = vset.pattern.permute.xlu0 0
      %618 = vperm.xlu0 %617, %v328
      %v619 = vpop.permute.xlu0 %618
      %622 = vset.pattern.permute.xlu0 0
      %623 = vperm.xlu0 %622, %v329
      %v624 = vpop.permute.xlu0 %623
      %627 = vset.pattern.permute.xlu0 0
      %628 = vperm.xlu0 %627, %v330
      %v629 = vpop.permute.xlu0 %628
      %632 = vset.pattern.permute.xlu0 0
      %633 = vperm.xlu0 %632, %v331
      %v634 = vpop.permute.xlu0 %633
      %637 = vset.pattern.permute.xlu0 0
      %638 = vperm.xlu0 %637, %v332
      %v639 = vpop.permute.xlu0 %638
      %642 = vset.pattern.permute.xlu0 0
      %643 = vperm.xlu0 %642, %v333
      %v644 = vpop.permute.xlu0 %643
      %647 = vset.pattern.permute.xlu0 0
      %648 = vperm.xlu0 %647, %v334
      %v649 = vpop.permute.xlu0 %648
      %652 = vset.pattern.permute.xlu0 0
      %653 = vperm.xlu0 %652, %v335
      %v654 = vpop.permute.xlu0 %653
      %657 = vset.pattern.permute.xlu0 0
      %658 = vperm.xlu0 %657, %v336
      %v659 = vpop.permute.xlu0 %658
      %662 = vset.pattern.permute.xlu0 0
      %663 = vperm.xlu0 %662, %v337
      %v664 = vpop.permute.xlu0 %663
      %667 = vset.pattern.permute.xlu0 0
      %668 = vperm.xlu0 %667, %v338
      %v669 = vpop.permute.xlu0 %668
      %672 = vset.pattern.permute.xlu0 0
      %673 = vperm.xlu0 %672, %v339
      %v674 = vpop.permute.xlu0 %673
      %677 = vset.pattern.permute.xlu0 0
      %678 = vperm.xlu0 %677, %v340
      %v679 = vpop.permute.xlu0 %678
      %682 = vset.pattern.permute.xlu0 0
      %683 = vperm.xlu0 %682, %v341
      %v684 = vpop.permute.xlu0 %683
      %687 = vset.pattern.permute.xlu0 0
      %688 = vperm.xlu0 %687, %v342
      %v689 = vpop.permute.xlu0 %688
      %692 = vset.pattern.permute.xlu0 0
      %693 = vperm.xlu0 %692, %v343
      %v694 = vpop.permute.xlu0 %693
      %697 = vset.pattern.permute.xlu0 0
      %698 = vperm.xlu0 %697, %v344
      %v699 = vpop.permute.xlu0 %698
      %702 = vset.pattern.permute.xlu0 0
      %703 = vperm.xlu0 %702, %v345
      %v704 = vpop.permute.xlu0 %703
      %707 = vset.pattern.permute.xlu0 0
      %708 = vperm.xlu0 %707, %v346
      %v709 = vpop.permute.xlu0 %708
      %712 = vset.pattern.permute.xlu0 0
      %713 = vperm.xlu0 %712, %v347
      %v714 = vpop.permute.xlu0 %713
      %717 = vset.pattern.permute.xlu0 0
      %718 = vperm.xlu0 %717, %v348
      %v719 = vpop.permute.xlu0 %718
      %722 = vset.pattern.permute.xlu0 0
      %723 = vperm.xlu0 %722, %v349
      %v724 = vpop.permute.xlu0 %723
      %727 = vset.pattern.permute.xlu0 0
      %728 = vperm.xlu0 %727, %v350
      %v729 = vpop.permute.xlu0 %728
      %732 = vset.pattern.permute.xlu0 0
      %733 = vperm.xlu0 %732, %v351
      %v734 = vpop.permute.xlu0 %733
      %v736 = vsel %vm575, %v579, %v659
      %v737 = vsel %vm575, %v584, %v664
      %v738 = vsel %vm575, %v589, %v669
      %v739 = vsel %vm575, %v594, %v674
      %v740 = vsel %vm575, %v599, %v679
      %v741 = vsel %vm575, %v604, %v684
      %v742 = vsel %vm575, %v609, %v689
      %v743 = vsel %vm575, %v614, %v694
      %v744 = vsel %vm575, %v619, %v699
      %v745 = vsel %vm575, %v624, %v704
      %v746 = vsel %vm575, %v629, %v709
      %v747 = vsel %vm575, %v634, %v714
      %v748 = vsel %vm575, %v639, %v719
      %v749 = vsel %vm575, %v644, %v724
      %v750 = vsel %vm575, %v649, %v729
      %v751 = vsel %vm575, %v654, %v734
      %v752 = vmul.f32 %v557, %v736
      %v753 = vmul.f32 %v558, %v737
      %v754 = vmul.f32 %v559, %v738
      %v755 = vmul.f32 %v560, %v739
      %v756 = vmul.f32 %v561, %v740
      %v757 = vmul.f32 %v562, %v741
      %v758 = vmul.f32 %v563, %v742
      %v759 = vmul.f32 %v564, %v743
      %v760 = vmul.f32 %v565, %v744
      %v761 = vmul.f32 %v566, %v745
      %v762 = vmul.f32 %v567, %v746
      %v763 = vmul.f32 %v568, %v747
      %v764 = vmul.f32 %v569, %v748
      %v765 = vmul.f32 %v570, %v749
      %v766 = vmul.f32 %v571, %v750
      %v767 = vmul.f32 %v572, %v751
      %v768 = vld [vmem:[%s4] sm:$0xff]
      %v769 = vld [vmem:[%s4 + $0x8] sm:$0xff]
      %v770 = vld [vmem:[%s4 + $0x10] sm:$0xff]
      %v771 = vld [vmem:[%s4 + $0x18] sm:$0xff]
      %v772 = vld [vmem:[%s4 + $0x20] sm:$0xff]
      %v773 = vld [vmem:[%s4 + $0x28] sm:$0xff]
      %v774 = vld [vmem:[%s4 + $0x30] sm:$0xff]
      %v775 = vld [vmem:[%s4 + $0x38] sm:$0xff]
      %v776 = vld [vmem:[%s4 + $0x40] sm:$0xff]
      %v777 = vld [vmem:[%s4 + $0x48] sm:$0xff]
      %v778 = vld [vmem:[%s4 + $0x50] sm:$0xff]
      %v779 = vld [vmem:[%s4 + $0x58] sm:$0xff]
      %v780 = vld [vmem:[%s4 + $0x60] sm:$0xff]
      %v781 = vld [vmem:[%s4 + $0x68] sm:$0xff]
      %v782 = vld [vmem:[%s4 + $0x70] sm:$0xff]
      %v783 = vld [vmem:[%s4 + $0x78] sm:$0xff]
      %784 = vmatprep.subr.mxu0 0.0
      %785 = vmatpush1.msra.mxu0 %v768
      %786 = vmatprep.subr.mxu0 0.0
      %787 = vmatpush1.msra.mxu0 %v769
      %788 = vmatprep.subr.mxu0 0.0
      %789 = vmatpush1.msra.mxu0 %v770
      %790 = vmatprep.subr.mxu0 0.0
      %791 = vmatpush1.msra.mxu0 %v771
      %792 = vmatprep.subr.mxu0 0.0
      %793 = vmatpush1.msra.mxu0 %v772
      %794 = vmatprep.subr.mxu0 0.0
      %795 = vmatpush1.msra.mxu0 %v773
      %796 = vmatprep.subr.mxu0 0.0
      %797 = vmatpush1.msra.mxu0 %v774
      %798 = vmatprep.subr.mxu0 0.0
      %799 = vmatpush1.msra.mxu0 %v775
      %800 = vmatprep.subr.mxu0 0.0
      %801 = vmatpush1.msra.mxu0 %v776
      %802 = vmatprep.subr.mxu0 0.0
      %803 = vmatpush1.msra.mxu0 %v777
      %804 = vmatprep.subr.mxu0 0.0
      %805 = vmatpush1.msra.mxu0 %v778
      %806 = vmatprep.subr.mxu0 0.0
      %807 = vmatpush1.msra.mxu0 %v779
      %808 = vmatprep.subr.mxu0 0.0
      %809 = vmatpush1.msra.mxu0 %v780
      %810 = vmatprep.subr.mxu0 0.0
      %811 = vmatpush1.msra.mxu0 %v781
      %812 = vmatprep.subr.mxu0 0.0
      %813 = vmatpush1.msra.mxu0 %v782
      %814 = vmatprep.subr.mxu0 0.0
      %815 = vmatpush1.msra.mxu0 %v783
      %816 = vmatprep.subr.mxu0 0.0
      %817 = vmatpush1.msra.mxu0 0.0
      %818 = vmatprep.subr.mxu0 0.0
      %819 = vmatpush1.msra.mxu0 0.0
      %820 = vmatprep.subr.mxu0 0.0
      %821 = vmatpush1.msra.mxu0 0.0
      %822 = vmatprep.subr.mxu0 0.0
      %823 = vmatpush1.msra.mxu0 0.0
      %824 = vmatprep.subr.mxu0 0.0
      %825 = vmatpush1.msra.mxu0 0.0
      %826 = vmatprep.subr.mxu0 0.0
      %827 = vmatpush1.msra.mxu0 0.0
      %828 = vmatprep.subr.mxu0 0.0
      %829 = vmatpush1.msra.mxu0 0.0
      %830 = vmatprep.subr.mxu0 0.0
      %831 = vmatpush1.msra.mxu0 0.0
      %832 = vmatprep.subr.mxu0 0.0
      %833 = vmatpush1.msra.mxu0 0.0
      %834 = vmatprep.subr.mxu0 0.0
      %835 = vmatpush1.msra.mxu0 0.0
      %836 = vmatprep.subr.mxu0 0.0
      %837 = vmatpush1.msra.mxu0 0.0
      %838 = vmatprep.subr.mxu0 0.0
      %839 = vmatpush1.msra.mxu0 0.0
      %840 = vmatprep.subr.mxu0 0.0
      %841 = vmatpush1.msra.mxu0 0.0
      %842 = vmatprep.subr.mxu0 0.0
      %843 = vmatpush1.msra.mxu0 0.0
      %844 = vmatprep.subr.mxu0 0.0
      %845 = vmatpush1.msra.mxu0 0.0
      %846 = vmatprep.subr.mxu0 0.0
      %847 = vmatpush1.msra.mxu0 0.0
      %848 = vmatprep.mubr.f32.mxu0 0.0
      %849 = vmatmul.mubr.f32.gmra.mrb[0].mxu0 %v752
      %v850 = vpop.f32.mrb[0].mxu0
      %v851 = vadd.f32 0.0, %v850
      %v852 = vpop.f32.mrb[0].mxu0
      %853 = vmatprep.mubr.f32.mxu0 0.0
      %854 = vmatmul.mubr.f32.gmra.mrb[0].mxu0 %v753
      %v855 = vpop.f32.mrb[0].mxu0
      %v856 = vadd.f32 0.0, %v855
      %v857 = vpop.f32.mrb[0].mxu0
      %858 = vmatprep.mubr.f32.mxu0 0.0
      %859 = vmatmul.mubr.f32.gmra.mrb[0].mxu0 %v754
      %v860 = vpop.f32.mrb[0].mxu0
      %v861 = vadd.f32 0.0, %v860
      %v862 = vpop.f32.mrb[0].mxu0
      %863 = vmatprep.mubr.f32.mxu0 0.0
      %864 = vmatmul.mubr.f32.gmra.mrb[0].mxu0 %v755
      %v865 = vpop.f32.mrb[0].mxu0
      %v866 = vadd.f32 0.0, %v865
      %v867 = vpop.f32.mrb[0].mxu0
      %868 = vmatprep.mubr.f32.mxu0 0.0
      %869 = vmatmul.mubr.f32.gmra.mrb[0].mxu0 %v756
      %v870 = vpop.f32.mrb[0].mxu0
      %v871 = vadd.f32 0.0, %v870
      %v872 = vpop.f32.mrb[0].mxu0
      %873 = vmatprep.mubr.f32.mxu0 0.0
      %874 = vmatmul.mubr.f32.gmra.mrb[0].mxu0 %v757
      %v875 = vpop.f32.mrb[0].mxu0
      %v876 = vadd.f32 0.0, %v875
      %v877 = vpop.f32.mrb[0].mxu0
      %878 = vmatprep.mubr.f32.mxu0 0.0
      %879 = vmatmul.mubr.f32.gmra.mrb[0].mxu0 %v758
      %v880 = vpop.f32.mrb[0].mxu0
      %v881 = vadd.f32 0.0, %v880
      %v882 = vpop.f32.mrb[0].mxu0
      %883 = vmatprep.mubr.f32.mxu0 0.0
      %884 = vmatmul.mubr.f32.gmra.mrb[0].mxu0 %v759
      %v885 = vpop.f32.mrb[0].mxu0
      %v886 = vadd.f32 0.0, %v885
      %v887 = vpop.f32.mrb[0].mxu0
      %888 = vmatprep.mubr.f32.mxu0 0.0
      %889 = vmatmul.mubr.f32.gmra.mrb[0].mxu0 %v760
      %v890 = vpop.f32.mrb[0].mxu0
      %v891 = vadd.f32 0.0, %v890
      %v892 = vpop.f32.mrb[0].mxu0
      %893 = vmatprep.mubr.f32.mxu0 0.0
      %894 = vmatmul.mubr.f32.gmra.mrb[0].mxu0 %v761
      %v895 = vpop.f32.mrb[0].mxu0
      %v896 = vadd.f32 0.0, %v895
      %v897 = vpop.f32.mrb[0].mxu0
      %898 = vmatprep.mubr.f32.mxu0 0.0
      %899 = vmatmul.mubr.f32.gmra.mrb[0].mxu0 %v762
      %v900 = vpop.f32.mrb[0].mxu0
      %v901 = vadd.f32 0.0, %v900
      %v902 = vpop.f32.mrb[0].mxu0
      %903 = vmatprep.mubr.f32.mxu0 0.0
      %904 = vmatmul.mubr.f32.gmra.mrb[0].mxu0 %v763
      %v905 = vpop.f32.mrb[0].mxu0
      %v906 = vadd.f32 0.0, %v905
      %v907 = vpop.f32.mrb[0].mxu0
      %908 = vmatprep.mubr.f32.mxu0 0.0
      %909 = vmatmul.mubr.f32.gmra.mrb[0].mxu0 %v764
      %v910 = vpop.f32.mrb[0].mxu0
      %v911 = vadd.f32 0.0, %v910
      %v912 = vpop.f32.mrb[0].mxu0
      %913 = vmatprep.mubr.f32.mxu0 0.0
      %914 = vmatmul.mubr.f32.gmra.mrb[0].mxu0 %v765
      %v915 = vpop.f32.mrb[0].mxu0
      %v916 = vadd.f32 0.0, %v915
      %v917 = vpop.f32.mrb[0].mxu0
      %918 = vmatprep.mubr.f32.mxu0 0.0
      %919 = vmatmul.mubr.f32.gmra.mrb[0].mxu0 %v766
      %v920 = vpop.f32.mrb[0].mxu0
      %v921 = vadd.f32 0.0, %v920
      %v922 = vpop.f32.mrb[0].mxu0
      %923 = vmatprep.mubr.f32.mxu0 0.0
      %924 = vmatmul.mubr.f32.gmra.mrb[0].mxu0 %v767
      %v925 = vpop.f32.mrb[0].mxu0
      %v926 = vadd.f32 0.0, %v925
      %v927 = vpop.f32.mrb[0].mxu0
      %928 = vdwg.mxu0
      %v929 = vadd.f32 %v304, %v851
      %v930 = vadd.f32 %v305, %v856
      %v931 = vadd.f32 %v306, %v861
      %v932 = vadd.f32 %v307, %v866
      %v933 = vadd.f32 %v308, %v871
      %v934 = vadd.f32 %v309, %v876
      %v935 = vadd.f32 %v310, %v881
      %v936 = vadd.f32 %v311, %v886
      %v937 = vadd.f32 %v312, %v891
      %v938 = vadd.f32 %v313, %v896
      %v939 = vadd.f32 %v314, %v901
      %v940 = vadd.f32 %v315, %v906
      %v941 = vadd.f32 %v316, %v911
      %v942 = vadd.f32 %v317, %v916
      %v943 = vadd.f32 %v318, %v921
      %v944 = vadd.f32 %v319, %v926
      %v945 = vld [vmem:[%s5] sm:$0x1]
      %v947 = vlaneseq
      %v948 = vshrl.u32 %v947, 7
      %v949 = vsub.s32 0, %v948
      %v950 = vrot.slane %v945, %v949
      %v952 = vmul.f32 %v579, %v950
      %v953 = vmul.f32 %v584, %v950
      %v954 = vmul.f32 %v589, %v950
      %v955 = vmul.f32 %v594, %v950
      %v956 = vmul.f32 %v599, %v950
      %v957 = vmul.f32 %v604, %v950
      %v958 = vmul.f32 %v609, %v950
      %v959 = vmul.f32 %v614, %v950
      %v960 = vmul.f32 %v619, %v950
      %v961 = vmul.f32 %v624, %v950
      %v962 = vmul.f32 %v629, %v950
      %v963 = vmul.f32 %v634, %v950
      %v964 = vmul.f32 %v639, %v950
      %v965 = vmul.f32 %v644, %v950
      %v966 = vmul.f32 %v649, %v950
      %v967 = vmul.f32 %v654, %v950
      %v968 = vadd.f32 %v929, %v952
      %v969 = vadd.f32 %v930, %v953
      %v970 = vadd.f32 %v931, %v954
      %v971 = vadd.f32 %v932, %v955
      %v972 = vadd.f32 %v933, %v956
      %v973 = vadd.f32 %v934, %v957
      %v974 = vadd.f32 %v935, %v958
      %v975 = vadd.f32 %v936, %v959
      %v976 = vadd.f32 %v937, %v960
      %v977 = vadd.f32 %v938, %v961
      %v978 = vadd.f32 %v939, %v962
      %v979 = vadd.f32 %v940, %v963
      %v980 = vadd.f32 %v941, %v964
      %v981 = vadd.f32 %v942, %v965
      %v982 = vadd.f32 %v943, %v966
      %v983 = vadd.f32 %v944, %v967
      %v984 = vld [vmem:[%s6] sm:$0x1]
      %v986 = vlaneseq
      %v987 = vshrl.u32 %v986, 7
      %v988 = vsub.s32 0, %v987
      %v989 = vrot.slane %v984, %v988
      %v991 = vmul.f32 %v659, %v989
      %v992 = vmul.f32 %v664, %v989
      %v993 = vmul.f32 %v669, %v989
      %v994 = vmul.f32 %v674, %v989
      %v995 = vmul.f32 %v679, %v989
      %v996 = vmul.f32 %v684, %v989
      %v997 = vmul.f32 %v689, %v989
      %v998 = vmul.f32 %v694, %v989
      %v999 = vmul.f32 %v699, %v989
      %v1000 = vmul.f32 %v704, %v989
      %v1001 = vmul.f32 %v709, %v989
      %v1002 = vmul.f32 %v714, %v989
      %v1003 = vmul.f32 %v719, %v989
      %v1004 = vmul.f32 %v724, %v989
      %v1005 = vmul.f32 %v729, %v989
      %v1006 = vmul.f32 %v734, %v989
      %v1007 = vadd.f32 %v968, %v991
      %v1008 = vadd.f32 %v969, %v992
      %v1009 = vadd.f32 %v970, %v993
      %v1010 = vadd.f32 %v971, %v994
      %v1011 = vadd.f32 %v972, %v995
      %v1012 = vadd.f32 %v973, %v996
      %v1013 = vadd.f32 %v974, %v997
      %v1014 = vadd.f32 %v975, %v998
      %v1015 = vadd.f32 %v976, %v999
      %v1016 = vadd.f32 %v977, %v1000
      %v1017 = vadd.f32 %v978, %v1001
      %v1018 = vadd.f32 %v979, %v1002
      %v1019 = vadd.f32 %v980, %v1003
      %v1020 = vadd.f32 %v981, %v1004
      %v1021 = vadd.f32 %v982, %v1005
      %v1022 = vadd.f32 %v983, %v1006
      %1023 = vst.msk [vmem:[%s302] sm:$0xff] %vm363, %v1007
      %1024 = vst.msk [vmem:[%s302 + $0x8] sm:$0xff] %vm363, %v1008
      %1025 = vst.msk [vmem:[%s302 + $0x10] sm:$0xff] %vm363, %v1009
      %1026 = vst.msk [vmem:[%s302 + $0x18] sm:$0xff] %vm363, %v1010
      %1027 = vst.msk [vmem:[%s302 + $0x20] sm:$0xff] %vm363, %v1011
      %1028 = vst.msk [vmem:[%s302 + $0x28] sm:$0xff] %vm363, %v1012
      %1029 = vst.msk [vmem:[%s302 + $0x30] sm:$0xff] %vm363, %v1013
      %1030 = vst.msk [vmem:[%s302 + $0x38] sm:$0xff] %vm363, %v1014
      %1031 = vst.msk [vmem:[%s302 + $0x40] sm:$0xff] %vm363, %v1015
      %1032 = vst.msk [vmem:[%s302 + $0x48] sm:$0xff] %vm363, %v1016
      %1033 = vst.msk [vmem:[%s302 + $0x50] sm:$0xff] %vm363, %v1017
      %1034 = vst.msk [vmem:[%s302 + $0x58] sm:$0xff] %vm363, %v1018
      %1035 = vst.msk [vmem:[%s302 + $0x60] sm:$0xff] %vm363, %v1019
      %1036 = vst.msk [vmem:[%s302 + $0x68] sm:$0xff] %vm363, %v1020
      %1037 = vst.msk [vmem:[%s302 + $0x70] sm:$0xff] %vm363, %v1021
      %1038 = vst.msk [vmem:[%s302 + $0x78] sm:$0xff] %vm363, %v1022
      %s1039 = smul.u32 16, %s18
      %p1040 = scmp.lt.s32.totalorder %s1039, 31
      %s1041 = scalar_select %p1040, %s1039, 31
      %s1042 = smul.addr %s1041, 8
      %s1043 = scalar_lea.vmem %s7, %s1042
      // Predicated region
      $region49: #{tpu_custom_call.1} parent=47 // pred_check
        %p1044 = pneg %p193
      $region50: #{tpu_custom_call.1} parent=47 // pred_check_branch
        %1046 = sbr.rel (%p1044) target = $region52
      $region51: #{tpu_custom_call.1} parent=47 // pred_region
        %s1047 = smul.u32 16, %s18
      $region52: #{tpu_custom_call.1} parent=47 // pred_fallthru
        _
    $region48: #{tpu_custom_call.1} parent=5 // pred_fallthru
      _
    %p1048 = scmp.le.s32.totalorder 2, %s13
    // Predicated region
    $region53: #{tpu_custom_call.1} parent=5 // pred_check
      %p1049 = pneg %p1048
    $region54: #{tpu_custom_call.1} parent=5 // pred_check_branch
      %1051 = sbr.rel (%p1049) target = $region56
    $region55: #{tpu_custom_call.1} parent=5 // pred_region
      %s1052 = ssub.s32 %s13, 2
      // Predicated region
      $region57: #{tpu_custom_call.1} parent=55 // pred_check
        %p1053 = pneg %p199
      $region58: #{tpu_custom_call.1} parent=55 // pred_check_branch
        %1055 = sbr.rel (%p1053) target = $region60
      $region59: #{tpu_custom_call.1} parent=55 // pred_region
        %s1056 = smul.u32 16, %s19
        %p1057 = scmp.lt.s32.totalorder %s1056, 31
        %s1058 = scalar_select %p1057, %s1056, 31
        %s1059 = smul.addr %s1058, 8
        %s1060 = scalar_lea.vmem %s7, %s1059
      $region60: #{tpu_custom_call.1} parent=55 // pred_fallthru
        _
    $region56: #{tpu_custom_call.1} parent=5 // pred_fallthru
      _
  $region6: #{tpu_custom_call.1} parent=0 // loop_footer
    %s17 = sadd.s32 1, %s13
  $region7: #{tpu_custom_call.1} parent=0 // loop_footer_branch
    %12 = sbr.rel target = $region3
  $region8: #{tpu_custom_call.1} parent=0 // loop_exit
    _

</llo_original>
